<compile_context>
chip_gen: v7x
topology: tpu7x:2x2x1
jax: 0.10.0
libtpu: 0.0.40
codegen_flags: <defaults>
</compile_context>

<pallas_src>
import jax
import jax.numpy as jnp
from jax.experimental import pallas as pl
from jax.experimental.pallas import tpu as pltpu


def _mlp_kernel(x_ref, t_ref, w1x_ref, w1t_ref, b1_ref, w2_ref, b2_ref, o_ref):
    # x: [TM, D]          (f32 or bf16)
    # t: [TM, 1]  f32     per-row time feature
    # w1x: [D, D]         first-layer weight, rows 0..D-1
    # w1t: [1, D] f32     first-layer weight, row D (time column)
    # b1, b2: [1, D] f32
    # w2: [D, D]
    # o: [TM, D]
    h = jnp.dot(x_ref[...], w1x_ref[...], preferred_element_type=jnp.float32)
    # Folded time feature + bias, all in f32, then ReLU.
    h = h + t_ref[...] * w1t_ref[...] + b1_ref[...]
    h = jnp.maximum(h, 0.0)
    out = jnp.dot(h.astype(w2_ref.dtype), w2_ref[...],
                  preferred_element_type=jnp.float32)
    out = out + b2_ref[...]
    o_ref[...] = out.astype(o_ref.dtype)


def diffusion_mlp(x_flat, t_row, w1x, w1t, b1, w2, b2, *, tile_m=512):
    """Fused (x,t) -> Linear -> ReLU -> Linear.

    x_flat: [M, D], t_row: [M, 1] f32, w1x: [D, D], w1t: [1, D] f32,
    b1/b2: [1, D] f32, w2: [D, D]  ->  [M, D] (dtype of x_flat).
    """
    M, D = x_flat.shape

    # Row tile: whole array if small, otherwise a sublane-aligned tile so the
    # grid gives double-buffered HBM/compute overlap.
    if M <= tile_m:
        tm = M
    else:
        tm = max(8, (tile_m // 8) * 8)
    grid = (pl.cdiv(M, tm),)

    # Explicit VMEM budget: double-buffered x / t / out tiles + resident weights.
    lane = 128
    dpad = ((D + lane - 1) // lane) * lane
    bx = x_flat.dtype.itemsize
    bw = w1x.dtype.itemsize
    vmem = (2 * tm * dpad * bx                 # x tiles (double buffered)
            + 2 * tm * lane * 4                # t_row tiles (lane-padded)
            + 2 * tm * dpad * bx               # out tiles (double buffered)
            + 2 * 2 * max(D, 8) * dpad * bw    # w1x, w2 (count 2 buffers, worst case)
            + 2 * 3 * 8 * dpad * 4             # w1t, b1, b2
            + (4 << 20))                       # compiler scratch slack
    vmem = int(min(max(vmem, 8 << 20), 64 << 20))

    return pl.pallas_call(
        _mlp_kernel,
        out_shape=jax.ShapeDtypeStruct((M, D), x_flat.dtype),
        grid=grid,
        in_specs=[
            pl.BlockSpec((tm, D), lambda i: (i, 0)),   # x      (tiled over rows)
            pl.BlockSpec((tm, 1), lambda i: (i, 0)),   # t_row  (tiled over rows)
            pl.BlockSpec((D, D), lambda i: (0, 0)),    # w1x    (VMEM resident)
            pl.BlockSpec((1, D), lambda i: (0, 0)),    # w1t
            pl.BlockSpec((1, D), lambda i: (0, 0)),    # b1
            pl.BlockSpec((D, D), lambda i: (0, 0)),    # w2
            pl.BlockSpec((1, D), lambda i: (0, 0)),    # b2
        ],
        out_specs=pl.BlockSpec((tm, D), lambda i: (i, 0)),
        compiler_params=pltpu.CompilerParams(
            dimension_semantics=("parallel",),
            vmem_limit_bytes=vmem,
        ),
    )(x_flat, t_row, w1x, w1t, b1, w2, b2)


class SimpleDiffusionJax:
    """JAX/Pallas port of SimpleDiffusion (forward pass)."""

    def __init__(self, dim, timesteps=1000, beta_start=1e-4, beta_end=0.02,
                 dtype=jnp.float32, tile_m=512, key=jax.random.PRNGKey(0)):
        self.dim = dim
        self.timesteps = timesteps
        self.dtype = dtype
        self.tile_m = tile_m

        betas = jnp.linspace(beta_start, beta_end, timesteps, dtype=jnp.float32)
        alphas = 1.0 - betas
        self.betas = betas
        self.alphas_cumprod = jnp.cumprod(alphas)

        k1, k2, k3, k4 = jax.random.split(key, 4)
        # nn.Linear(dim+1, dim): weight [dim, dim+1], bias [dim]
        bound1 = 1.0 / jnp.sqrt(dim + 1)
        w1_t = jax.random.uniform(k1, (dim, dim + 1), jnp.float32, -bound1, bound1)
        b1 = jax.random.uniform(k2, (dim,), jnp.float32, -bound1, bound1)
        # nn.Linear(dim, dim): weight [dim, dim], bias [dim]
        bound2 = 1.0 / jnp.sqrt(dim)
        w2_t = jax.random.uniform(k3, (dim, dim), jnp.float32, -bound2, bound2)
        b2 = jax.random.uniform(k4, (dim,), jnp.float32, -bound2, bound2)

        # Pre-transpose so the kernel computes y = x @ W (PyTorch does x @ W.T),
        # and split W1 into the x-part (rows 0..D-1) and the time row (row D).
        w1 = w1_t.T                                   # [dim+1, dim]
        self.w1x = w1[:dim, :].astype(dtype)          # [dim, dim]   (compute dtype)
        self.w1t = w1[dim:, :].astype(jnp.float32)    # [1, dim]     (keep f32)
        self.b1 = b1.reshape(1, dim).astype(jnp.float32)
        self.w2 = w2_t.T.astype(dtype)                # [dim, dim]   (compute dtype)
        self.b2 = b2.reshape(1, dim).astype(jnp.float32)

    def forward(self, x, t):
        """x: [B, S, D] float, t: [B] int -> [B, S, D]."""
        B, S, D = x.shape
        assert D == self.dim
        x_flat = x.reshape(B * S, D).astype(self.dtype)          # zero-copy view + cast
        # Per-row time feature, kept f32 (t up to timesteps-1 not bf16-exact).
        t_row = jnp.repeat(t.astype(jnp.float32), S).reshape(B * S, 1)
        out_flat = diffusion_mlp(x_flat, t_row, self.w1x, self.w1t, self.b1,
                                 self.w2, self.b2, tile_m=self.tile_m)
        return out_flat.reshape(B, S, D)

    __call__ = forward

    def q_sample(self, x_start, t, noise):
        # Elementwise scaling; plain JAX (not the requested hot path).
        sqrt_ac = jnp.sqrt(self.alphas_cumprod[t]).reshape(-1, 1, 1)
        sqrt_om = jnp.sqrt(1.0 - self.alphas_cumprod[t]).reshape(-1, 1, 1)
        return sqrt_ac * x_start + sqrt_om * noise


if __name__ == "__main__":
    B, S, D = 2, 8, 32
    key = jax.random.PRNGKey(0)
    kx, kt, kparams = jax.random.split(key, 3)

    x = jax.random.normal(kx, (B, S, D), dtype=jnp.float32)
    t = jax.random.randint(kt, (B,), 0, 1000)

    model = SimpleDiffusionJax(dim=D, key=kparams)   # f32 demo path

    out = model.forward(x, t)
    out = jax.block_until_ready(out)
    assert out.shape == (B, S, D)

    # Reference: plain-JAX replica of the PyTorch forward (explicit concat path),
    # to verify the folded-time-feature kernel matches the original semantics.
    t_feat = jnp.broadcast_to(t.astype(jnp.float32)[:, None, None], (B, S, 1))
    xt = jnp.concatenate([x, t_feat], axis=2).reshape(B * S, D + 1)
    w1_full = jnp.concatenate([model.w1x.astype(jnp.float32), model.w1t], axis=0)
    h = jnp.maximum(
        jnp.dot(xt, w1_full, precision=jax.lax.Precision.HIGHEST) + model.b1, 0.0)
    ref = (jnp.dot(h, model.w2.astype(jnp.float32),
                   precision=jax.lax.Precision.HIGHEST) + model.b2).reshape(B, S, D)

    err = float(jnp.max(jnp.abs(out - ref)))
    assert jnp.allclose(out, ref, atol=1e-2, rtol=1e-3), f"max abs err = {err}"

    print("KERNEL_OK")
</pallas_src>

<mosaic_0001>
module attributes {stable_mosaic.version = 11 : i64} {
  func.func @_mlp_kernel(%arg0: i32, %arg1: memref<16x32xf32, #tpu.memory_space<vmem>>, %arg2: memref<16x1xf32, #tpu.memory_space<vmem>>, %arg3: memref<32x32xf32, #tpu.memory_space<vmem>>, %arg4: memref<1x32xf32, #tpu.memory_space<vmem>>, %arg5: memref<1x32xf32, #tpu.memory_space<vmem>>, %arg6: memref<32x32xf32, #tpu.memory_space<vmem>>, %arg7: memref<1x32xf32, #tpu.memory_space<vmem>>, %arg8: memref<16x32xf32, #tpu.memory_space<vmem>>) attributes {dimension_semantics = [#tpu.dimension_semantics<parallel>], iteration_bounds = array<i64: 1>, scalar_prefetch = 0 : i64, scratch_operands = 0 : i64, tpu.core_type = #tpu.core_type<tc>, window_params = [{transform_indices = @transform_0, window_bounds = array<i64: 16, 32>}, {transform_indices = @transform_1, window_bounds = array<i64: 16, 1>}, {pipeline_mode = #tpu.pipeline_mode<synchronous>, transform_indices = @transform_2, window_bounds = array<i64: 32, 32>}, {pipeline_mode = #tpu.pipeline_mode<synchronous>, transform_indices = @transform_3, window_bounds = array<i64: 1, 32>}, {pipeline_mode = #tpu.pipeline_mode<synchronous>, transform_indices = @transform_4, window_bounds = array<i64: 1, 32>}, {pipeline_mode = #tpu.pipeline_mode<synchronous>, transform_indices = @transform_5, window_bounds = array<i64: 32, 32>}, {pipeline_mode = #tpu.pipeline_mode<synchronous>, transform_indices = @transform_6, window_bounds = array<i64: 1, 32>}, {transform_indices = @transform_7, window_bounds = array<i64: 16, 32>}]} {
    %c0 = arith.constant 0 : index
    %c0_0 = arith.constant 0 : index
    %0 = vector.load %arg1[%c0, %c0_0] : memref<16x32xf32, #tpu.memory_space<vmem>>, vector<16x32xf32>
    %c0_1 = arith.constant 0 : index
    %c0_2 = arith.constant 0 : index
    %1 = vector.load %arg3[%c0_1, %c0_2] : memref<32x32xf32, #tpu.memory_space<vmem>>, vector<32x32xf32>
    %cst = arith.constant dense<0.000000e+00> : vector<16x32xf32>
    %2 = tpu.matmul %0, %1, %cst {dimension_numbers = #tpu.dot_dimension_numbers<[1], [0], [0], [1], [0, 0, 1, 1], [], []>} : vector<16x32xf32>, vector<32x32xf32>, vector<16x32xf32> -> vector<16x32xf32>
    %c0_3 = arith.constant 0 : index
    %c0_4 = arith.constant 0 : index
    %3 = vector.load %arg2[%c0_3, %c0_4] : memref<16x1xf32, #tpu.memory_space<vmem>>, vector<16x1xf32>
    %c0_5 = arith.constant 0 : index
    %c0_6 = arith.constant 0 : index
    %4 = vector.load %arg4[%c0_5, %c0_6] : memref<1x32xf32, #tpu.memory_space<vmem>>, vector<1x32xf32>
    %5 = vector.broadcast %3 : vector<16x1xf32> to vector<16x32xf32>
    %6 = vector.broadcast %4 : vector<1x32xf32> to vector<16x32xf32>
    %7 = arith.mulf %5, %6 : vector<16x32xf32>
    %8 = arith.addf %2, %7 : vector<16x32xf32>
    %c0_7 = arith.constant 0 : index
    %c0_8 = arith.constant 0 : index
    %9 = vector.load %arg5[%c0_7, %c0_8] : memref<1x32xf32, #tpu.memory_space<vmem>>, vector<1x32xf32>
    %10 = vector.broadcast %9 : vector<1x32xf32> to vector<16x32xf32>
    %11 = arith.addf %8, %10 : vector<16x32xf32>
    %cst_9 = arith.constant 0.000000e+00 : f32
    %12 = vector.broadcast %cst_9 : f32 to vector<16x32xf32>
    %13 = arith.maximumf %11, %12 : vector<16x32xf32>
    %c0_10 = arith.constant 0 : index
    %c0_11 = arith.constant 0 : index
    %14 = vector.load %arg6[%c0_10, %c0_11] : memref<32x32xf32, #tpu.memory_space<vmem>>, vector<32x32xf32>
    %cst_12 = arith.constant dense<0.000000e+00> : vector<16x32xf32>
    %15 = tpu.matmul %13, %14, %cst_12 {dimension_numbers = #tpu.dot_dimension_numbers<[1], [0], [0], [1], [0, 0, 1, 1], [], []>} : vector<16x32xf32>, vector<32x32xf32>, vector<16x32xf32> -> vector<16x32xf32>
    %c0_13 = arith.constant 0 : index
    %c0_14 = arith.constant 0 : index
    %16 = vector.load %arg7[%c0_13, %c0_14] : memref<1x32xf32, #tpu.memory_space<vmem>>, vector<1x32xf32>
    %17 = vector.broadcast %16 : vector<1x32xf32> to vector<16x32xf32>
    %18 = arith.addf %15, %17 : vector<16x32xf32>
    %c0_15 = arith.constant 0 : index
    %c0_16 = arith.constant 0 : index
    %19 = vector.load %arg8[%c0_15, %c0_16] : memref<16x32xf32, #tpu.memory_space<vmem>>, vector<16x32xf32>
    tpu.vector_store %arg8[%c0_15, %c0_16], %18 {strides = array<i32>} : memref<16x32xf32, #tpu.memory_space<vmem>>, vector<16x32xf32>,
    return
  }
  func.func @transform_0(%arg0: i32) -> (i32, i32) {
    %c0_i32 = arith.constant 0 : i32
    %c0_i32_0 = arith.constant 0 : i32
    return %arg0, %c0_i32 : i32, i32
  }
  func.func @transform_1(%arg0: i32) -> (i32, i32) {
    %c0_i32 = arith.constant 0 : i32
    %c0_i32_0 = arith.constant 0 : i32
    return %arg0, %c0_i32 : i32, i32
  }
  func.func @transform_2(%arg0: i32) -> (i32, i32) {
    %c0_i32 = arith.constant 0 : i32
    %c0_i32_0 = arith.constant 0 : i32
    %c0_i32_1 = arith.constant 0 : i32
    return %c0_i32, %c0_i32_0 : i32, i32
  }
  func.func @transform_3(%arg0: i32) -> (i32, i32) {
    %c0_i32 = arith.constant 0 : i32
    %c0_i32_0 = arith.constant 0 : i32
    %c0_i32_1 = arith.constant 0 : i32
    return %c0_i32, %c0_i32_0 : i32, i32
  }
  func.func @transform_4(%arg0: i32) -> (i32, i32) {
    %c0_i32 = arith.constant 0 : i32
    %c0_i32_0 = arith.constant 0 : i32
    %c0_i32_1 = arith.constant 0 : i32
    return %c0_i32, %c0_i32_0 : i32, i32
  }
  func.func @transform_5(%arg0: i32) -> (i32, i32) {
    %c0_i32 = arith.constant 0 : i32
    %c0_i32_0 = arith.constant 0 : i32
    %c0_i32_1 = arith.constant 0 : i32
    return %c0_i32, %c0_i32_0 : i32, i32
  }
  func.func @transform_6(%arg0: i32) -> (i32, i32) {
    %c0_i32 = arith.constant 0 : i32
    %c0_i32_0 = arith.constant 0 : i32
    %c0_i32_1 = arith.constant 0 : i32
    return %c0_i32, %c0_i32_0 : i32, i32
  }
  func.func @transform_7(%arg0: i32) -> (i32, i32) {
    %c0_i32 = arith.constant 0 : i32
    %c0_i32_0 = arith.constant 0 : i32
    return %arg0, %c0_i32 : i32, i32
  }
}

</mosaic_0001>

<llo_original>
// kernel: tpu_custom_call.1
$region0: #{tpu_custom_call.1}
  #allocation0 [shape = 'u32[]', space=smem, size = 0x4, offset = 0x4, fixed_abs, tag = 'smem constant byte address 0x4 - core index']
  #allocation1 [shape = 'u32[144,128]{1,0:T(1,128)}', space=vmem, size = 0x12000, scoped, tag = 'internal scratch']
  %s0 = inlined_call_operand.hbm [shape: f32[16,32], index: 0, kind: input, shape index: {}]
  %s1 = inlined_call_operand.vmem [shape: f32[16,1], index: 1, kind: input, shape index: {}]
  %s2 = inlined_call_operand.hbm [shape: f32[32,32], index: 2, kind: input, shape index: {}]
  %s3 = inlined_call_operand.vmem [shape: f32[1,32], index: 3, kind: input, shape index: {}]
  %s4 = inlined_call_operand.vmem [shape: f32[1,32], index: 4, kind: input, shape index: {}]
  %s5 = inlined_call_operand.vmem [shape: f32[32,32], index: 5, kind: input, shape index: {}]
  %s6 = inlined_call_operand.vmem [shape: f32[1,32], index: 6, kind: input, shape index: {}]
  %s7 = inlined_call_operand.hbm [shape: f32[16,32], index: 7, kind: output, shape index: {}]
  %s8 = sld [smem:[#allocation0]]
  $region46: #{tpu_custom_call.1} parent=0
    _
  %s10 = ssub.s32 1, %s8
  %s11 = scalar_select 0, %s10, %s8
  $region1: #{tpu_custom_call.1} parent=0
    #allocation2 [shape = 'u8[8192]{0}', space=vmem, size = 0x2000, scoped, tag = 'input window, operand 0, single buffered']
    #allocation3 [shape = 's32[1]{0}', space=sflag, size = 0x4, scoped, tag = 'scoped memory for tpu_custom_call.1']
    #allocation4 [shape = 's32[1]{0}', space=sflag, size = 0x4, scoped, tag = 'scoped memory for tpu_custom_call.1']
    #allocation5 [shape = 'u8[16384]{0}', space=vmem, size = 0x4000, scoped, tag = 'input window, operand 2, single buffered']
    #allocation6 [shape = 's32[1]{0}', space=sflag, size = 0x4, scoped, tag = 'scoped memory for tpu_custom_call.1']
    #allocation7 [shape = 'u8[8192]{0}', space=vmem, size = 0x2000, scoped, tag = 'output window, operand 0, single buffered']
    %12 = vsyncpa [#allocation3], 0
    %13 = vsyncpa [#allocation6], 0
    %14 = vsyncpa [#allocation4], 0
    // Predicated region
    $region2: #{tpu_custom_call.1} parent=1 // pred_check
      _
    $region3: #{tpu_custom_call.1} parent=1 // pred_check_branch
      %16 = sbr.rel (0) target = $region5
    $region4: #{tpu_custom_call.1} parent=1 // pred_region
      %s18 = ssub.s32 256, 256
      %19 = vsyncadd [#allocation3], %s18
      %s20 = sshll.u32 [#allocation2], 4
      %s21 = int_to_ptr.vmem [resolvable:$true] %s20
      %26 = dma.hbm_to_vmem [thread:$0]  %s0, 256, %s21, [#allocation3], 128, 128, 8
    $region5: #{tpu_custom_call.1} parent=1 // pred_fallthru
      _
    // Predicated region
    $region6: #{tpu_custom_call.1} parent=1 // pred_check
      _
    $region7: #{tpu_custom_call.1} parent=1 // pred_check_branch
      %28 = sbr.rel (0) target = $region9
    $region8: #{tpu_custom_call.1} parent=1 // pred_region
      _
    $region9: #{tpu_custom_call.1} parent=1 // pred_fallthru
      _
    // Predicated region
    $region10: #{tpu_custom_call.1} parent=1 // pred_check
      _
    $region11: #{tpu_custom_call.1} parent=1 // pred_check_branch
      %30 = sbr.rel (0) target = $region13
    $region12: #{tpu_custom_call.1} parent=1 // pred_region
      %s32 = ssub.s32 512, 512
      %33 = vsyncadd [#allocation6], %s32
      %s34 = sshll.u32 [#allocation5], 4
      %s35 = int_to_ptr.vmem [resolvable:$true] %s34
      %40 = dma.hbm_to_vmem [thread:$0]  %s2, 512, %s35, [#allocation6], 128, 128, 8
    $region13: #{tpu_custom_call.1} parent=1 // pred_fallthru
      _
    // Predicated region
    $region14: #{tpu_custom_call.1} parent=1 // pred_check
      _
    $region15: #{tpu_custom_call.1} parent=1 // pred_check_branch
      %42 = sbr.rel (0) target = $region17
    $region16: #{tpu_custom_call.1} parent=1 // pred_region
      _
    $region17: #{tpu_custom_call.1} parent=1 // pred_fallthru
      _
    // Predicated region
    $region18: #{tpu_custom_call.1} parent=1 // pred_check
      _
    $region19: #{tpu_custom_call.1} parent=1 // pred_check_branch
      %44 = sbr.rel (0) target = $region21
    $region20: #{tpu_custom_call.1} parent=1 // pred_region
      _
    $region21: #{tpu_custom_call.1} parent=1 // pred_fallthru
      _
    // Predicated region
    $region22: #{tpu_custom_call.1} parent=1 // pred_check
      _
    $region23: #{tpu_custom_call.1} parent=1 // pred_check_branch
      %46 = sbr.rel (0) target = $region25
    $region24: #{tpu_custom_call.1} parent=1 // pred_region
      _
    $region25: #{tpu_custom_call.1} parent=1 // pred_fallthru
      _
    // Predicated region
    $region26: #{tpu_custom_call.1} parent=1 // pred_check
      _
    $region27: #{tpu_custom_call.1} parent=1 // pred_check_branch
      %48 = sbr.rel (0) target = $region29
    $region28: #{tpu_custom_call.1} parent=1 // pred_region
      _
    $region29: #{tpu_custom_call.1} parent=1 // pred_fallthru
      _
    // Predicated region
    $region30: #{tpu_custom_call.1} parent=1 // pred_check
      _
    $region31: #{tpu_custom_call.1} parent=1 // pred_check_branch
      %50 = sbr.rel (0) target = $region33
    $region32: #{tpu_custom_call.1} parent=1 // pred_region
      %51 = dma.done [#allocation3], 256
    $region33: #{tpu_custom_call.1} parent=1 // pred_fallthru
      _
    // Predicated region
    $region34: #{tpu_custom_call.1} parent=1 // pred_check
      _
    $region35: #{tpu_custom_call.1} parent=1 // pred_check_branch
      %53 = sbr.rel (0) target = $region37
    $region36: #{tpu_custom_call.1} parent=1 // pred_region
      %54 = dma.done [#allocation6], 512
    $region37: #{tpu_custom_call.1} parent=1 // pred_fallthru
      _
    %v55 = vld [vmem:[#allocation2] sm:$0xff]
    %v56 = vld [vmem:[#allocation2 + $0x8] sm:$0xff]
    %v57 = vld [vmem:[#allocation5] sm:$0xff]
    %v58 = vld [vmem:[#allocation5 + $0x8] sm:$0xff]
    %v59 = vld [vmem:[#allocation5 + $0x10] sm:$0xff]
    %v60 = vld [vmem:[#allocation5 + $0x18] sm:$0xff]
    %v61 = vld [vmem:[%s1] sm:$0xff]
    %v62 = vld [vmem:[%s1 + $0x8] sm:$0xff]
    %v63 = vld [vmem:[%s3] sm:$0x1]
    %65 = vset.pattern.permute.xlu0 0
    %66 = vperm.xlu0 %65, %v61
    %v67 = vpop.permute.xlu0 %66
    %70 = vset.pattern.permute.xlu0 0
    %71 = vperm.xlu0 %70, %v62
    %v72 = vpop.permute.xlu0 %71
    %v75 = vlaneseq
    %v76 = vshrl.u32 %v75, 7
    %v77 = vsub.s32 0, %v76
    %v78 = vrot.slane %v63, %v77
    %v80 = vmul.f32 %v67, %v78
    %v81 = vmul.f32 %v72, %v78
    %vm82 = vcmask 261120
    %v84 = vsel %vm82, %v55, 0
    %v87 = vsel %vm82, %v56, 0
    %89 = vmatprep.subr.mxu0 0.0
    %90 = vmatpush1.msra.mxu0 %v57
    %91 = vmatprep.subr.mxu0 0.0
    %92 = vmatpush1.msra.mxu0 %v58
    %93 = vmatprep.subr.mxu0 0.0
    %94 = vmatpush1.msra.mxu0 %v59
    %95 = vmatprep.subr.mxu0 0.0
    %96 = vmatpush1.msra.mxu0 %v60
    %97 = vmatprep.subr.mxu0 0.0
    %98 = vmatpush1.msra.mxu0 0.0
    %99 = vmatprep.subr.mxu0 0.0
    %100 = vmatpush1.msra.mxu0 0.0
    %101 = vmatprep.subr.mxu0 0.0
    %102 = vmatpush1.msra.mxu0 0.0
    %103 = vmatprep.subr.mxu0 0.0
    %104 = vmatpush1.msra.mxu0 0.0
    %105 = vmatprep.subr.mxu0 0.0
    %106 = vmatpush1.msra.mxu0 0.0
    %107 = vmatprep.subr.mxu0 0.0
    %108 = vmatpush1.msra.mxu0 0.0
    %109 = vmatprep.subr.mxu0 0.0
    %110 = vmatpush1.msra.mxu0 0.0
    %111 = vmatprep.subr.mxu0 0.0
    %112 = vmatpush1.msra.mxu0 0.0
    %113 = vmatprep.subr.mxu0 0.0
    %114 = vmatpush1.msra.mxu0 0.0
    %115 = vmatprep.subr.mxu0 0.0
    %116 = vmatpush1.msra.mxu0 0.0
    %117 = vmatprep.subr.mxu0 0.0
    %118 = vmatpush1.msra.mxu0 0.0
    %119 = vmatprep.subr.mxu0 0.0
    %120 = vmatpush1.msra.mxu0 0.0
    %121 = vmatprep.subr.mxu0 0.0
    %122 = vmatpush1.msra.mxu0 0.0
    %123 = vmatprep.subr.mxu0 0.0
    %124 = vmatpush1.msra.mxu0 0.0
    %125 = vmatprep.subr.mxu0 0.0
    %126 = vmatpush1.msra.mxu0 0.0
    %127 = vmatprep.subr.mxu0 0.0
    %128 = vmatpush1.msra.mxu0 0.0
    %129 = vmatprep.subr.mxu0 0.0
    %130 = vmatpush1.msra.mxu0 0.0
    %131 = vmatprep.subr.mxu0 0.0
    %132 = vmatpush1.msra.mxu0 0.0
    %133 = vmatprep.subr.mxu0 0.0
    %134 = vmatpush1.msra.mxu0 0.0
    %135 = vmatprep.subr.mxu0 0.0
    %136 = vmatpush1.msra.mxu0 0.0
    %137 = vmatprep.subr.mxu0 0.0
    %138 = vmatpush1.msra.mxu0 0.0
    %139 = vmatprep.subr.mxu0 0.0
    %140 = vmatpush1.msra.mxu0 0.0
    %141 = vmatprep.subr.mxu0 0.0
    %142 = vmatpush1.msra.mxu0 0.0
    %143 = vmatprep.subr.mxu0 0.0
    %144 = vmatpush1.msra.mxu0 0.0
    %145 = vmatprep.subr.mxu0 0.0
    %146 = vmatpush1.msra.mxu0 0.0
    %147 = vmatprep.subr.mxu0 0.0
    %148 = vmatpush1.msra.mxu0 0.0
    %149 = vmatprep.subr.mxu0 0.0
    %150 = vmatpush1.msra.mxu0 0.0
    %151 = vmatprep.subr.mxu0 0.0
    %152 = vmatpush1.msra.mxu0 0.0
    %153 = vmatprep.mubr.f32.mxu0 0.0
    %154 = vmatmul.mubr.f32.gmra.mrb[0].mxu0 %v84
    %v155 = vpop.f32.mrb[0].mxu0
    %v156 = vadd.f32 %v80, %v155
    %v157 = vpop.f32.mrb[0].mxu0
    %158 = vmatprep.mubr.f32.mxu0 0.0
    %159 = vmatmul.mubr.f32.gmra.mrb[0].mxu0 %v87
    %v160 = vpop.f32.mrb[0].mxu0
    %v161 = vadd.f32 %v81, %v160
    %v162 = vpop.f32.mrb[0].mxu0
    %163 = vdwg.mxu0
    %v164 = vld [vmem:[%s4] sm:$0x1]
    %v166 = vlaneseq
    %v167 = vshrl.u32 %v166, 7
    %v168 = vsub.s32 0, %v167
    %v169 = vrot.slane %v164, %v168
    %v171 = vadd.f32 %v156, %v169
    %v172 = vadd.f32 %v161, %v169
    %v173 = vmax.f32 %v171, 0.0
    %v174 = vmax.f32 %v172, 0.0
    %v175 = vld [vmem:[%s5] sm:$0xff]
    %v176 = vld [vmem:[%s5 + $0x8] sm:$0xff]
    %v177 = vld [vmem:[%s5 + $0x10] sm:$0xff]
    %v178 = vld [vmem:[%s5 + $0x18] sm:$0xff]
    %v179 = vld [vmem:[%s6] sm:$0x1]
    %v181 = vlaneseq
    %v182 = vshrl.u32 %v181, 7
    %v183 = vsub.s32 0, %v182
    %v184 = vrot.slane %v179, %v183
    %v187 = vsel %vm82, %v173, 0
    %v190 = vsel %vm82, %v174, 0
    %192 = vmatprep.subr.mxu0 0.0
    %193 = vmatpush1.msra.mxu0 %v175
    %194 = vmatprep.subr.mxu0 0.0
    %195 = vmatpush1.msra.mxu0 %v176
    %196 = vmatprep.subr.mxu0 0.0
    %197 = vmatpush1.msra.mxu0 %v177
    %198 = vmatprep.subr.mxu0 0.0
    %199 = vmatpush1.msra.mxu0 %v178
    %200 = vmatprep.subr.mxu0 0.0
    %201 = vmatpush1.msra.mxu0 0.0
    %202 = vmatprep.subr.mxu0 0.0
    %203 = vmatpush1.msra.mxu0 0.0
    %204 = vmatprep.subr.mxu0 0.0
    %205 = vmatpush1.msra.mxu0 0.0
    %206 = vmatprep.subr.mxu0 0.0
    %207 = vmatpush1.msra.mxu0 0.0
    %208 = vmatprep.subr.mxu0 0.0
    %209 = vmatpush1.msra.mxu0 0.0
    %210 = vmatprep.subr.mxu0 0.0
    %211 = vmatpush1.msra.mxu0 0.0
    %212 = vmatprep.subr.mxu0 0.0
    %213 = vmatpush1.msra.mxu0 0.0
    %214 = vmatprep.subr.mxu0 0.0
    %215 = vmatpush1.msra.mxu0 0.0
    %216 = vmatprep.subr.mxu0 0.0
    %217 = vmatpush1.msra.mxu0 0.0
    %218 = vmatprep.subr.mxu0 0.0
    %219 = vmatpush1.msra.mxu0 0.0
    %220 = vmatprep.subr.mxu0 0.0
    %221 = vmatpush1.msra.mxu0 0.0
    %222 = vmatprep.subr.mxu0 0.0
    %223 = vmatpush1.msra.mxu0 0.0
    %224 = vmatprep.subr.mxu0 0.0
    %225 = vmatpush1.msra.mxu0 0.0
    %226 = vmatprep.subr.mxu0 0.0
    %227 = vmatpush1.msra.mxu0 0.0
    %228 = vmatprep.subr.mxu0 0.0
    %229 = vmatpush1.msra.mxu0 0.0
    %230 = vmatprep.subr.mxu0 0.0
    %231 = vmatpush1.msra.mxu0 0.0
    %232 = vmatprep.subr.mxu0 0.0
    %233 = vmatpush1.msra.mxu0 0.0
    %234 = vmatprep.subr.mxu0 0.0
    %235 = vmatpush1.msra.mxu0 0.0
    %236 = vmatprep.subr.mxu0 0.0
    %237 = vmatpush1.msra.mxu0 0.0
    %238 = vmatprep.subr.mxu0 0.0
    %239 = vmatpush1.msra.mxu0 0.0
    %240 = vmatprep.subr.mxu0 0.0
    %241 = vmatpush1.msra.mxu0 0.0
    %242 = vmatprep.subr.mxu0 0.0
    %243 = vmatpush1.msra.mxu0 0.0
    %244 = vmatprep.subr.mxu0 0.0
    %245 = vmatpush1.msra.mxu0 0.0
    %246 = vmatprep.subr.mxu0 0.0
    %247 = vmatpush1.msra.mxu0 0.0
    %248 = vmatprep.subr.mxu0 0.0
    %249 = vmatpush1.msra.mxu0 0.0
    %250 = vmatprep.subr.mxu0 0.0
    %251 = vmatpush1.msra.mxu0 0.0
    %252 = vmatprep.subr.mxu0 0.0
    %253 = vmatpush1.msra.mxu0 0.0
    %254 = vmatprep.subr.mxu0 0.0
    %255 = vmatpush1.msra.mxu0 0.0
    %256 = vmatprep.mubr.f32.mxu0 0.0
    %257 = vmatmul.mubr.f32.gmra.mrb[0].mxu0 %v187
    %v258 = vpop.f32.mrb[0].mxu0
    %v259 = vadd.f32 %v184, %v258
    %v260 = vpop.f32.mrb[0].mxu0
    %261 = vmatprep.mubr.f32.mxu0 0.0
    %262 = vmatmul.mubr.f32.gmra.mrb[0].mxu0 %v190
    %v263 = vpop.f32.mrb[0].mxu0
    %v264 = vadd.f32 %v184, %v263
    %v265 = vpop.f32.mrb[0].mxu0
    %266 = vdwg.mxu0
    %267 = vst.msk [vmem:[#allocation7] sm:$0xff] %vm82, %v259
    %268 = vst.msk [vmem:[#allocation7 + $0x8] sm:$0xff] %vm82, %v264
    // Predicated region
    $region38: #{tpu_custom_call.1} parent=1 // pred_check
      _
    $region39: #{tpu_custom_call.1} parent=1 // pred_check_branch
      %270 = sbr.rel (0) target = $region41
    $region40: #{tpu_custom_call.1} parent=1 // pred_region
      %s272 = ssub.s32 256, 256
      %273 = vsyncadd [#allocation4], %s272
      %s274 = sshll.u32 [#allocation7], 4
      %s275 = int_to_ptr.vmem [resolvable:$true] %s274
      %280 = dma.vmem_to_hbm [thread:$0]  %s275, 256, %s7, [#allocation4], 128, 128, 8
    $region41: #{tpu_custom_call.1} parent=1 // pred_fallthru
      _
    // Predicated region
    $region42: #{tpu_custom_call.1} parent=1 // pred_check
      _
    $region43: #{tpu_custom_call.1} parent=1 // pred_check_branch
      %282 = sbr.rel (0) target = $region45
    $region44: #{tpu_custom_call.1} parent=1 // pred_region
      %283 = dma.done [#allocation4], 256
    $region45: #{tpu_custom_call.1} parent=1 // pred_fallthru
      _
    %284 = vsyncpa [#allocation3], 1
    %285 = vsyncpa [#allocation6], 1
    %286 = vsyncpa [#allocation4], 1

</llo_original>
